<compile_context>
chip_gen: v6e
topology: v6e:2x2x1
jax: 0.10.0
libtpu: 0.0.40
codegen_flags: <defaults>
</compile_context>

<pallas_src>
import jax
import jax.numpy as jnp
from jax.experimental import pallas as pl
from jax.experimental.pallas import tpu as pltpu


def _round_up(n, m):
    return ((n + m - 1) // m) * m


def _cdiv(a, b):
    return (a + b - 1) // b


def critic_kernel(x_ref, w1_ref, b1_ref, w2_ref, b2_ref, wq_ref, bq_ref, o_ref):
    # Transposed ("batch on lanes") orientation:
    #   x_ref : [S+A, tb]  activation tile, batch on the lane axis (pipelined)
    #   w*_ref: PyTorch [out, in] layout, resident in VMEM across the grid
    #   o_ref : [1, tb]    lane-dense q output block
    x = x_ref[...]

    # fc1 + relu:  h1ᵀ = relu(W1 · xᵀ + b1)   -> [fc1, tb]
    h1 = jnp.dot(w1_ref[...], x, preferred_element_type=jnp.float32) + b1_ref[...]
    h1 = jnp.maximum(h1, 0.0)

    # fc2 + relu:  h2ᵀ = relu(W2 · h1ᵀ + b2)  -> [fc2, tb]
    h2 = jnp.dot(w2_ref[...], h1, preferred_element_type=jnp.float32) + b2_ref[...]
    h2 = jnp.maximum(h2, 0.0)

    # q1 head:     qᵀ = Wq · h2ᵀ + bq         -> [1, tb]  (lane-dense store)
    q = jnp.dot(wq_ref[...], h2, preferred_element_type=jnp.float32) + bq_ref[...]
    o_ref[...] = q.astype(o_ref.dtype)


def critic_forward(state, action, params, *, block_b=2048):
    """state: [B, state_dims], action: [B, action_dims] -> q: [B, 1]."""
    w1, b1, w2, b2, wq, bq = params
    B, S = state.shape
    A = action.shape[1]
    fc1 = w1.shape[1]
    fc2 = w2.shape[1]

    # One-time (tiny, ~6 KB) param massaging into PyTorch [out, in] layout
    # with column-vector biases that lane-broadcast inside the kernel.
    w1_t = w1.T                      # [fc1, S+A]
    w2_t = w2.T                      # [fc2, fc1]
    wq_t = wq.T                      # [1,   fc2]
    b1_c = b1.reshape(fc1, 1)
    b2_c = b2.reshape(fc2, 1)
    bq_c = bq.reshape(1, 1)

    # Batch tile on the lane axis: multiple of 128, capped by block_b and by
    # the (rounded-up) batch itself.
    tb = max(128, min(_round_up(block_b, 128), _round_up(B, 128)))
    # v7x: if the whole batch fits in one tile but spans >1 lane group, split
    # into two grid steps so both TensorCores get work (no-op on v5e/v6e).
    if B > 128 and _round_up(B, 128) <= tb:
        tb = _round_up(_cdiv(B, 2), 128)
    b_pad = _round_up(B, tb)
    grid = (b_pad // tb,)

    # Transposed, zero-padded activations: xᵀ = cat(state, action)ᵀ  [S+A, Bp].
    # (Layout plumbing in the wrapper; traffic is only (S+A)*B*4 bytes.)
    x_t = jnp.concatenate([state, action], axis=1).T
    if b_pad > B:
        x_t = jnp.pad(x_t, ((0, 0), (0, b_pad - B)))

    def resident(shape):
        # Full-array block with a constant block index: fetched once, then
        # kept resident in VMEM across all grid steps.
        return pl.BlockSpec(shape, lambda i: (0, 0))

    q_t = pl.pallas_call(
        critic_kernel,
        out_shape=jax.ShapeDtypeStruct((1, b_pad), jnp.float32),
        grid=grid,
        in_specs=[
            pl.BlockSpec((S + A, tb), lambda i: (0, i)),   # xᵀ (pipelined)
            resident(w1_t.shape), resident(b1_c.shape),
            resident(w2_t.shape), resident(b2_c.shape),
            resident(wq_t.shape), resident(bq_c.shape),
        ],
        out_specs=pl.BlockSpec((1, tb), lambda i: (0, i)),
        compiler_params=pltpu.CompilerParams(
            # Batch tiles are independent -> shard across v7x's 2 TensorCores.
            dimension_semantics=("parallel",),
        ),
    )(x_t, w1_t, b1_c, w2_t, b2_c, wq_t, bq_c)

    return q_t[0, :B].reshape(B, 1)


def init_params(key, state_dims, action_dims, fc1_dims, fc2_dims):
    """torch.nn.Linear-style U(-1/sqrt(fan_in), +1/sqrt(fan_in)) init.

    Weights are stored as [in_features, out_features] for the pure-JAX
    reference; the Pallas wrapper transposes them once into [out, in].
    """
    in1 = state_dims + action_dims
    ks = jax.random.split(key, 6)

    def linear(kw, kb, fan_in, fan_out):
        bound = 1.0 / (fan_in ** 0.5)
        w = jax.random.uniform(kw, (fan_in, fan_out), jnp.float32, -bound, bound)
        b = jax.random.uniform(kb, (fan_out,), jnp.float32, -bound, bound)
        return w, b

    w1, b1 = linear(ks[0], ks[1], in1, fc1_dims)
    w2, b2 = linear(ks[2], ks[3], fc1_dims, fc2_dims)
    wq, bq = linear(ks[4], ks[5], fc2_dims, 1)
    return (w1, b1, w2, b2, wq, bq)


def reference_forward(state, action, params):
    """Pure-JAX f32 reference matching the PyTorch module's forward()."""
    w1, b1, w2, b2, wq, bq = params
    x = jnp.concatenate([state, action], axis=1)
    h1 = jnp.maximum(x @ w1 + b1, 0.0)
    h2 = jnp.maximum(h1 @ w2 + b2, 0.0)
    return h2 @ wq + bq


if __name__ == "__main__":
    # Shapes consistent with the module: state_dims=(8,), action_dims=4,
    # fc1_dims=32, fc2_dims=32, batch=2.
    state_dims, action_dims = 8, 4
    fc1_dims, fc2_dims = 32, 32

    key = jax.random.PRNGKey(0)
    k_s, k_a, k_p, k_s2, k_a2, k_s3, k_a3 = jax.random.split(key, 7)
    params = init_params(k_p, state_dims, action_dims, fc1_dims, fc2_dims)

    # --- Test 1: tiny batch (single 128-lane tile, heavy padding) ------------
    batch = 2
    state = jax.random.normal(k_s, (batch, state_dims), jnp.float32)
    action = jax.random.normal(k_a, (batch, action_dims), jnp.float32)
    q = critic_forward(state, action, params)
    jax.block_until_ready(q)
    q_ref = reference_forward(state, action, params)
    assert q.shape == (batch, 1), q.shape
    assert jnp.allclose(q, q_ref, atol=2e-2, rtol=2e-2), (q, q_ref)

    # --- Test 2: multi-tile path (grid of 3, padded last tile) ---------------
    batch2 = 300
    state2 = jax.random.normal(k_s2, (batch2, state_dims), jnp.float32)
    action2 = jax.random.normal(k_a2, (batch2, action_dims), jnp.float32)
    q2 = critic_forward(state2, action2, params, block_b=128)
    jax.block_until_ready(q2)
    q2_ref = reference_forward(state2, action2, params)
    assert q2.shape == (batch2, 1), q2.shape
    assert jnp.allclose(q2, q2_ref, atol=2e-2, rtol=2e-2), (q2, q2_ref)

    # --- Test 3: default block_b with the two-TensorCore split path ----------
    batch3 = 200
    state3 = jax.random.normal(k_s3, (batch3, state_dims), jnp.float32)
    action3 = jax.random.normal(k_a3, (batch3, action_dims), jnp.float32)
    q3 = critic_forward(state3, action3, params)   # tb -> 128, grid of 2
    jax.block_until_ready(q3)
    q3_ref = reference_forward(state3, action3, params)
    assert q3.shape == (batch3, 1), q3.shape
    assert jnp.allclose(q3, q3_ref, atol=2e-2, rtol=2e-2), (q3, q3_ref)

    print("KERNEL_OK")
</pallas_src>

<mosaic_0001>
module attributes {stable_mosaic.version = 11 : i64} {
  func.func @critic_kernel(%arg0: i32, %arg1: memref<12x128xf32, #tpu.memory_space<vmem>>, %arg2: memref<32x12xf32, #tpu.memory_space<vmem>>, %arg3: memref<32x1xf32, #tpu.memory_space<vmem>>, %arg4: memref<32x32xf32, #tpu.memory_space<vmem>>, %arg5: memref<32x1xf32, #tpu.memory_space<vmem>>, %arg6: memref<1x32xf32, #tpu.memory_space<vmem>>, %arg7: memref<1x1xf32, #tpu.memory_space<vmem>>, %arg8: memref<1x128xf32, #tpu.memory_space<vmem>>) attributes {dimension_semantics = [#tpu.dimension_semantics<parallel>], iteration_bounds = array<i64: 1>, scalar_prefetch = 0 : i64, scratch_operands = 0 : i64, tpu.core_type = #tpu.core_type<tc>, window_params = [{transform_indices = @transform_0, window_bounds = array<i64: 12, 128>}, {pipeline_mode = #tpu.pipeline_mode<synchronous>, transform_indices = @transform_1, window_bounds = array<i64: 32, 12>}, {pipeline_mode = #tpu.pipeline_mode<synchronous>, transform_indices = @transform_2, window_bounds = array<i64: 32, 1>}, {pipeline_mode = #tpu.pipeline_mode<synchronous>, transform_indices = @transform_3, window_bounds = array<i64: 32, 32>}, {pipeline_mode = #tpu.pipeline_mode<synchronous>, transform_indices = @transform_4, window_bounds = array<i64: 32, 1>}, {pipeline_mode = #tpu.pipeline_mode<synchronous>, transform_indices = @transform_5, window_bounds = array<i64: 1, 32>}, {pipeline_mode = #tpu.pipeline_mode<synchronous>, transform_indices = @transform_6, window_bounds = array<i64: 1, 1>}, {transform_indices = @transform_7, window_bounds = array<i64: 1, 128>}]} {
    %c0 = arith.constant 0 : index
    %c0_0 = arith.constant 0 : index
    %0 = vector.load %arg1[%c0, %c0_0] : memref<12x128xf32, #tpu.memory_space<vmem>>, vector<12x128xf32>
    %c0_1 = arith.constant 0 : index
    %c0_2 = arith.constant 0 : index
    %1 = vector.load %arg2[%c0_1, %c0_2] : memref<32x12xf32, #tpu.memory_space<vmem>>, vector<32x12xf32>
    %cst = arith.constant dense<0.000000e+00> : vector<32x128xf32>
    %2 = tpu.matmul %1, %0, %cst {dimension_numbers = #tpu.dot_dimension_numbers<[1], [0], [0], [1], [0, 0, 1, 1], [], []>} : vector<32x12xf32>, vector<12x128xf32>, vector<32x128xf32> -> vector<32x128xf32>
    %c0_3 = arith.constant 0 : index
    %c0_4 = arith.constant 0 : index
    %3 = vector.load %arg3[%c0_3, %c0_4] : memref<32x1xf32, #tpu.memory_space<vmem>>, vector<32x1xf32>
    %4 = vector.broadcast %3 : vector<32x1xf32> to vector<32x128xf32>
    %5 = arith.addf %2, %4 : vector<32x128xf32>
    %cst_5 = arith.constant 0.000000e+00 : f32
    %6 = vector.broadcast %cst_5 : f32 to vector<32x128xf32>
    %7 = arith.maximumf %5, %6 : vector<32x128xf32>
    %c0_6 = arith.constant 0 : index
    %c0_7 = arith.constant 0 : index
    %8 = vector.load %arg4[%c0_6, %c0_7] : memref<32x32xf32, #tpu.memory_space<vmem>>, vector<32x32xf32>
    %cst_8 = arith.constant dense<0.000000e+00> : vector<32x128xf32>
    %9 = tpu.matmul %8, %7, %cst_8 {dimension_numbers = #tpu.dot_dimension_numbers<[1], [0], [0], [1], [0, 0, 1, 1], [], []>} : vector<32x32xf32>, vector<32x128xf32>, vector<32x128xf32> -> vector<32x128xf32>
    %c0_9 = arith.constant 0 : index
    %c0_10 = arith.constant 0 : index
    %10 = vector.load %arg5[%c0_9, %c0_10] : memref<32x1xf32, #tpu.memory_space<vmem>>, vector<32x1xf32>
    %11 = vector.broadcast %10 : vector<32x1xf32> to vector<32x128xf32>
    %12 = arith.addf %9, %11 : vector<32x128xf32>
    %cst_11 = arith.constant 0.000000e+00 : f32
    %13 = vector.broadcast %cst_11 : f32 to vector<32x128xf32>
    %14 = arith.maximumf %12, %13 : vector<32x128xf32>
    %c0_12 = arith.constant 0 : index
    %c0_13 = arith.constant 0 : index
    %15 = vector.load %arg6[%c0_12, %c0_13] : memref<1x32xf32, #tpu.memory_space<vmem>>, vector<1x32xf32>
    %cst_14 = arith.constant dense<0.000000e+00> : vector<1x128xf32>
    %16 = tpu.matmul %15, %14, %cst_14 {dimension_numbers = #tpu.dot_dimension_numbers<[1], [0], [0], [1], [0, 0, 1, 1], [], []>} : vector<1x32xf32>, vector<32x128xf32>, vector<1x128xf32> -> vector<1x128xf32>
    %c0_15 = arith.constant 0 : index
    %c0_16 = arith.constant 0 : index
    %17 = vector.load %arg7[%c0_15, %c0_16] : memref<1x1xf32, #tpu.memory_space<vmem>>, vector<1x1xf32>
    %18 = vector.broadcast %17 : vector<1x1xf32> to vector<1x128xf32>
    %19 = arith.addf %16, %18 : vector<1x128xf32>
    %c0_17 = arith.constant 0 : index
    %c0_18 = arith.constant 0 : index
    %20 = vector.load %arg8[%c0_17, %c0_18] : memref<1x128xf32, #tpu.memory_space<vmem>>, vector<1x128xf32>
    tpu.vector_store %arg8[%c0_17, %c0_18], %19 {strides = array<i32>} : memref<1x128xf32, #tpu.memory_space<vmem>>, vector<1x128xf32>,
    return
  }
  func.func @transform_0(%arg0: i32) -> (i32, i32) {
    %c0_i32 = arith.constant 0 : i32
    %c0_i32_0 = arith.constant 0 : i32
    return %c0_i32, %arg0 : i32, i32
  }
  func.func @transform_1(%arg0: i32) -> (i32, i32) {
    %c0_i32 = arith.constant 0 : i32
    %c0_i32_0 = arith.constant 0 : i32
    %c0_i32_1 = arith.constant 0 : i32
    return %c0_i32, %c0_i32_0 : i32, i32
  }
  func.func @transform_2(%arg0: i32) -> (i32, i32) {
    %c0_i32 = arith.constant 0 : i32
    %c0_i32_0 = arith.constant 0 : i32
    %c0_i32_1 = arith.constant 0 : i32
    return %c0_i32, %c0_i32_0 : i32, i32
  }
  func.func @transform_3(%arg0: i32) -> (i32, i32) {
    %c0_i32 = arith.constant 0 : i32
    %c0_i32_0 = arith.constant 0 : i32
    %c0_i32_1 = arith.constant 0 : i32
    return %c0_i32, %c0_i32_0 : i32, i32
  }
  func.func @transform_4(%arg0: i32) -> (i32, i32) {
    %c0_i32 = arith.constant 0 : i32
    %c0_i32_0 = arith.constant 0 : i32
    %c0_i32_1 = arith.constant 0 : i32
    return %c0_i32, %c0_i32_0 : i32, i32
  }
  func.func @transform_5(%arg0: i32) -> (i32, i32) {
    %c0_i32 = arith.constant 0 : i32
    %c0_i32_0 = arith.constant 0 : i32
    %c0_i32_1 = arith.constant 0 : i32
    return %c0_i32, %c0_i32_0 : i32, i32
  }
  func.func @transform_6(%arg0: i32) -> (i32, i32) {
    %c0_i32 = arith.constant 0 : i32
    %c0_i32_0 = arith.constant 0 : i32
    %c0_i32_1 = arith.constant 0 : i32
    return %c0_i32, %c0_i32_0 : i32, i32
  }
  func.func @transform_7(%arg0: i32) -> (i32, i32) {
    %c0_i32 = arith.constant 0 : i32
    %c0_i32_0 = arith.constant 0 : i32
    return %c0_i32, %arg0 : i32, i32
  }
}

</mosaic_0001>

<llo_original>
// kernel: tpu_custom_call.1
$region0: #{tpu_custom_call.1}
  #allocation0 [shape = 'u32[]', space=smem, size = 0x4, offset = 0x4, fixed_abs, tag = 'smem constant byte address 0x4 - core index']
  #allocation1 [shape = 'u32[144,128]{1,0:T(1,128)}', space=vmem, size = 0x12000, scoped, tag = 'internal scratch']
  #allocation2 [shape = 'f32[1,1]{1,0:T(1,128)S(1)}', space=vmem, size = 0x200, scoped, tag = 'scoped memory for tpu_custom_call.1']
  %s0 = inlined_call_operand.vmem [shape: f32[12,128], index: 0, kind: input, shape index: {}]
  %s1 = inlined_call_operand.vmem [shape: f32[32,12], index: 1, kind: input, shape index: {}]
  %s2 = inlined_call_operand.vmem [shape: f32[32,1], index: 2, kind: input, shape index: {}]
  %s3 = inlined_call_operand.vmem [shape: f32[32,32], index: 3, kind: input, shape index: {}]
  %s4 = inlined_call_operand.vmem [shape: f32[32,1], index: 4, kind: input, shape index: {}]
  %s5 = inlined_call_operand.vmem [shape: f32[1,32], index: 5, kind: input, shape index: {}]
  %s6 = inlined_call_operand.<no memory space> [shape: f32[1,1], index: 6, kind: input, shape index: {}]
  %s7 = inlined_call_operand.hbm [shape: f32[1,128], index: 7, kind: output, shape index: {}]
  %s8 = sld [smem:[#allocation0]]
  $region38: #{tpu_custom_call.1} parent=0
    _
  %s10 = ssub.s32 1, %s8
  %s11 = scalar_select 0, %s10, %s8
  %v12 = vstv %s6
  %13 = vst [vmem:[#allocation2] sm:$0x1] %v12
  $region1: #{tpu_custom_call.1} parent=0
    #allocation3 [shape = 'u8[512]{0}', space=vmem, size = 0x400, scoped, tag = 'output window, operand 0, single buffered']
    #allocation4 [shape = 's32[1]{0}', space=sflag, size = 0x4, scoped, tag = 'scoped memory for tpu_custom_call.1']
    %14 = vsyncpa [#allocation4], 0
    // Predicated region
    $region2: #{tpu_custom_call.1} parent=1 // pred_check
      _
    $region3: #{tpu_custom_call.1} parent=1 // pred_check_branch
      %16 = sbr.rel (0) target = $region5
    $region4: #{tpu_custom_call.1} parent=1 // pred_region
      _
    $region5: #{tpu_custom_call.1} parent=1 // pred_fallthru
      _
    // Predicated region
    $region6: #{tpu_custom_call.1} parent=1 // pred_check
      _
    $region7: #{tpu_custom_call.1} parent=1 // pred_check_branch
      %18 = sbr.rel (0) target = $region9
    $region8: #{tpu_custom_call.1} parent=1 // pred_region
      _
    $region9: #{tpu_custom_call.1} parent=1 // pred_fallthru
      _
    // Predicated region
    $region10: #{tpu_custom_call.1} parent=1 // pred_check
      _
    $region11: #{tpu_custom_call.1} parent=1 // pred_check_branch
      %20 = sbr.rel (0) target = $region13
    $region12: #{tpu_custom_call.1} parent=1 // pred_region
      _
    $region13: #{tpu_custom_call.1} parent=1 // pred_fallthru
      _
    // Predicated region
    $region14: #{tpu_custom_call.1} parent=1 // pred_check
      _
    $region15: #{tpu_custom_call.1} parent=1 // pred_check_branch
      %22 = sbr.rel (0) target = $region17
    $region16: #{tpu_custom_call.1} parent=1 // pred_region
      _
    $region17: #{tpu_custom_call.1} parent=1 // pred_fallthru
      _
    // Predicated region
    $region18: #{tpu_custom_call.1} parent=1 // pred_check
      _
    $region19: #{tpu_custom_call.1} parent=1 // pred_check_branch
      %24 = sbr.rel (0) target = $region21
    $region20: #{tpu_custom_call.1} parent=1 // pred_region
      _
    $region21: #{tpu_custom_call.1} parent=1 // pred_fallthru
      _
    // Predicated region
    $region22: #{tpu_custom_call.1} parent=1 // pred_check
      _
    $region23: #{tpu_custom_call.1} parent=1 // pred_check_branch
      %26 = sbr.rel (0) target = $region25
    $region24: #{tpu_custom_call.1} parent=1 // pred_region
      _
    $region25: #{tpu_custom_call.1} parent=1 // pred_fallthru
      _
    // Predicated region
    $region26: #{tpu_custom_call.1} parent=1 // pred_check
      _
    $region27: #{tpu_custom_call.1} parent=1 // pred_check_branch
      %28 = sbr.rel (0) target = $region29
    $region28: #{tpu_custom_call.1} parent=1 // pred_region
      _
    $region29: #{tpu_custom_call.1} parent=1 // pred_fallthru
      _
    %v29 = vld [vmem:[%s0] sm:$0xff]
    %v30 = vld [vmem:[%s0 + $0x8] sm:$0xf]
    %v31 = vld [vmem:[%s1] sm:$0xff]
    %v32 = vld [vmem:[%s1 + $0x8] sm:$0xff]
    %v33 = vld [vmem:[%s1 + $0x10] sm:$0xff]
    %v34 = vld [vmem:[%s1 + $0x18] sm:$0xff]
    %v35 = vld [vmem:[%s2] sm:$0xff]
    %v36 = vld [vmem:[%s2 + $0x8] sm:$0xff]
    %v37 = vld [vmem:[%s2 + $0x10] sm:$0xff]
    %v38 = vld [vmem:[%s2 + $0x18] sm:$0xff]
    %40 = vset.pattern.permute.xlu0 0
    %41 = vperm.xlu0 %40, %v35
    %v42 = vpop.permute.xlu0 %41
    %45 = vset.pattern.permute.xlu0 0
    %46 = vperm.xlu0 %45, %v36
    %v47 = vpop.permute.xlu0 %46
    %50 = vset.pattern.permute.xlu0 0
    %51 = vperm.xlu0 %50, %v37
    %v52 = vpop.permute.xlu0 %51
    %55 = vset.pattern.permute.xlu0 0
    %56 = vperm.xlu0 %55, %v38
    %v57 = vpop.permute.xlu0 %56
    %vm59 = vcmask 97280
    %v61 = vsel %vm59, %v31, 0
    %v64 = vsel %vm59, %v32, 0
    %v67 = vsel %vm59, %v33, 0
    %v70 = vsel %vm59, %v34, 0
    %vm72 = vcmask 1043456
    %v74 = vsel %vm72, %v30, 0
    %76 = vmatprep.subr.mxu0 0.0
    %77 = vmatpush1.msra.mxu0 0.0
    %78 = vmatprep.subr.mxu0 0.0
    %79 = vmatpush1.msra.mxu0 0.0
    %80 = vmatprep.subr.mxu0 0.0
    %81 = vmatpush1.msra.mxu0 0.0
    %82 = vmatprep.subr.mxu0 0.0
    %83 = vmatpush1.msra.mxu0 0.0
    %84 = vmatprep.subr.mxu0 0.0
    %85 = vmatpush1.msra.mxu0 0.0
    %86 = vmatprep.subr.mxu0 0.0
    %87 = vmatpush1.msra.mxu0 0.0
    %88 = vmatprep.subr.mxu0 0.0
    %89 = vmatpush1.msra.mxu0 0.0
    %90 = vmatprep.subr.mxu0 0.0
    %91 = vmatpush1.msra.mxu0 0.0
    %92 = vmatprep.subr.mxu0 0.0
    %93 = vmatpush1.msra.mxu0 0.0
    %94 = vmatprep.subr.mxu0 0.0
    %95 = vmatpush1.msra.mxu0 0.0
    %96 = vmatprep.subr.mxu0 0.0
    %97 = vmatpush1.msra.mxu0 0.0
    %98 = vmatprep.subr.mxu0 0.0
    %99 = vmatpush1.msra.mxu0 0.0
    %100 = vmatprep.subr.mxu0 0.0
    %101 = vmatpush1.msra.mxu0 0.0
    %102 = vmatprep.subr.mxu0 0.0
    %103 = vmatpush1.msra.mxu0 0.0
    %104 = vmatprep.subr.mxu0 0.0
    %105 = vmatpush1.msra.mxu0 %v74
    %106 = vmatprep.subr.mxu0 0.0
    %107 = vmatpush1.msra.mxu0 %v29
    %108 = vmatprep.subr.mxu0 0.0
    %109 = vmatpush2.msra.mxu0 0.0
    %110 = vmatprep.subr.mxu0 0.0
    %111 = vmatpush2.msra.mxu0 0.0
    %112 = vmatprep.subr.mxu0 0.0
    %113 = vmatpush2.msra.mxu0 0.0
    %114 = vmatprep.subr.mxu0 0.0
    %115 = vmatpush2.msra.mxu0 0.0
    %116 = vmatprep.subr.mxu0 0.0
    %117 = vmatpush2.msra.mxu0 0.0
    %118 = vmatprep.subr.mxu0 0.0
    %119 = vmatpush2.msra.mxu0 0.0
    %120 = vmatprep.subr.mxu0 0.0
    %121 = vmatpush2.msra.mxu0 0.0
    %122 = vmatprep.subr.mxu0 0.0
    %123 = vmatpush2.msra.mxu0 0.0
    %124 = vmatprep.subr.mxu0 0.0
    %125 = vmatpush2.msra.mxu0 0.0
    %126 = vmatprep.subr.mxu0 0.0
    %127 = vmatpush2.msra.mxu0 0.0
    %128 = vmatprep.subr.mxu0 0.0
    %129 = vmatpush2.msra.mxu0 0.0
    %130 = vmatprep.subr.mxu0 0.0
    %131 = vmatpush2.msra.mxu0 0.0
    %132 = vmatprep.subr.mxu0 0.0
    %133 = vmatpush2.msra.mxu0 0.0
    %134 = vmatprep.subr.mxu0 0.0
    %135 = vmatpush2.msra.mxu0 0.0
    %136 = vmatprep.subr.mxu0 0.0
    %137 = vmatpush2.msra.mxu0 0.0
    %138 = vmatprep.subr.mxu0 0.0
    %139 = vmatpush2.msra.mxu0 0.0
    %140 = vmatprep.mubr.f32.mxu0 0.0
    %141 = vmatmul.mubr.f32.gmra.mxu0 %v61
    %v142 = vpop.f32.mrf.mxu0
    %v143 = vadd.f32 %v42, %v142
    %v144 = vpop.f32.mrf.mxu0
    %145 = vmatprep.mubr.f32.mxu0 0.0
    %146 = vmatmul.mubr.f32.gmra.mxu0 %v64
    %v147 = vpop.f32.mrf.mxu0
    %v148 = vadd.f32 %v47, %v147
    %v149 = vpop.f32.mrf.mxu0
    %150 = vmatprep.mubr.f32.mxu0 0.0
    %151 = vmatmul.mubr.f32.gmra.mxu0 %v67
    %v152 = vpop.f32.mrf.mxu0
    %v153 = vadd.f32 %v52, %v152
    %v154 = vpop.f32.mrf.mxu0
    %155 = vmatprep.mubr.f32.mxu0 0.0
    %156 = vmatmul.mubr.f32.gmra.mxu0 %v70
    %v157 = vpop.f32.mrf.mxu0
    %v158 = vadd.f32 %v57, %v157
    %v159 = vpop.f32.mrf.mxu0
    %160 = vdwg.mxu0
    %v161 = vmax.f32 %v143, 0.0
    %v162 = vmax.f32 %v148, 0.0
    %v163 = vmax.f32 %v153, 0.0
    %v164 = vmax.f32 %v158, 0.0
    %v165 = vld [vmem:[%s3] sm:$0xff]
    %v166 = vld [vmem:[%s3 + $0x8] sm:$0xff]
    %v167 = vld [vmem:[%s3 + $0x10] sm:$0xff]
    %v168 = vld [vmem:[%s3 + $0x18] sm:$0xff]
    %v169 = vld [vmem:[%s4] sm:$0xff]
    %v170 = vld [vmem:[%s4 + $0x8] sm:$0xff]
    %v171 = vld [vmem:[%s4 + $0x10] sm:$0xff]
    %v172 = vld [vmem:[%s4 + $0x18] sm:$0xff]
    %174 = vset.pattern.permute.xlu0 0
    %175 = vperm.xlu0 %174, %v169
    %v176 = vpop.permute.xlu0 %175
    %179 = vset.pattern.permute.xlu0 0
    %180 = vperm.xlu0 %179, %v170
    %v181 = vpop.permute.xlu0 %180
    %184 = vset.pattern.permute.xlu0 0
    %185 = vperm.xlu0 %184, %v171
    %v186 = vpop.permute.xlu0 %185
    %189 = vset.pattern.permute.xlu0 0
    %190 = vperm.xlu0 %189, %v172
    %v191 = vpop.permute.xlu0 %190
    %vm193 = vcmask 261120
    %v195 = vsel %vm193, %v165, 0
    %v198 = vsel %vm193, %v166, 0
    %v201 = vsel %vm193, %v167, 0
    %v204 = vsel %vm193, %v168, 0
    %206 = vmatprep.subr.mxu0 0.0
    %207 = vmatpush1.msra.mxu0 0.0
    %208 = vmatprep.subr.mxu0 0.0
    %209 = vmatpush1.msra.mxu0 0.0
    %210 = vmatprep.subr.mxu0 0.0
    %211 = vmatpush1.msra.mxu0 0.0
    %212 = vmatprep.subr.mxu0 0.0
    %213 = vmatpush1.msra.mxu0 0.0
    %214 = vmatprep.subr.mxu0 0.0
    %215 = vmatpush1.msra.mxu0 0.0
    %216 = vmatprep.subr.mxu0 0.0
    %217 = vmatpush1.msra.mxu0 0.0
    %218 = vmatprep.subr.mxu0 0.0
    %219 = vmatpush1.msra.mxu0 0.0
    %220 = vmatprep.subr.mxu0 0.0
    %221 = vmatpush1.msra.mxu0 0.0
    %222 = vmatprep.subr.mxu0 0.0
    %223 = vmatpush1.msra.mxu0 0.0
    %224 = vmatprep.subr.mxu0 0.0
    %225 = vmatpush1.msra.mxu0 0.0
    %226 = vmatprep.subr.mxu0 0.0
    %227 = vmatpush1.msra.mxu0 0.0
    %228 = vmatprep.subr.mxu0 0.0
    %229 = vmatpush1.msra.mxu0 0.0
    %230 = vmatprep.subr.mxu0 0.0
    %231 = vmatpush1.msra.mxu0 %v164
    %232 = vmatprep.subr.mxu0 0.0
    %233 = vmatpush1.msra.mxu0 %v163
    %234 = vmatprep.subr.mxu0 0.0
    %235 = vmatpush1.msra.mxu0 %v162
    %236 = vmatprep.subr.mxu0 0.0
    %237 = vmatpush1.msra.mxu0 %v161
    %238 = vmatprep.subr.mxu0 0.0
    %239 = vmatpush2.msra.mxu0 0.0
    %240 = vmatprep.subr.mxu0 0.0
    %241 = vmatpush2.msra.mxu0 0.0
    %242 = vmatprep.subr.mxu0 0.0
    %243 = vmatpush2.msra.mxu0 0.0
    %244 = vmatprep.subr.mxu0 0.0
    %245 = vmatpush2.msra.mxu0 0.0
    %246 = vmatprep.subr.mxu0 0.0
    %247 = vmatpush2.msra.mxu0 0.0
    %248 = vmatprep.subr.mxu0 0.0
    %249 = vmatpush2.msra.mxu0 0.0
    %250 = vmatprep.subr.mxu0 0.0
    %251 = vmatpush2.msra.mxu0 0.0
    %252 = vmatprep.subr.mxu0 0.0
    %253 = vmatpush2.msra.mxu0 0.0
    %254 = vmatprep.subr.mxu0 0.0
    %255 = vmatpush2.msra.mxu0 0.0
    %256 = vmatprep.subr.mxu0 0.0
    %257 = vmatpush2.msra.mxu0 0.0
    %258 = vmatprep.subr.mxu0 0.0
    %259 = vmatpush2.msra.mxu0 0.0
    %260 = vmatprep.subr.mxu0 0.0
    %261 = vmatpush2.msra.mxu0 0.0
    %262 = vmatprep.subr.mxu0 0.0
    %263 = vmatpush2.msra.mxu0 0.0
    %264 = vmatprep.subr.mxu0 0.0
    %265 = vmatpush2.msra.mxu0 0.0
    %266 = vmatprep.subr.mxu0 0.0
    %267 = vmatpush2.msra.mxu0 0.0
    %268 = vmatprep.subr.mxu0 0.0
    %269 = vmatpush2.msra.mxu0 0.0
    %270 = vmatprep.mubr.f32.mxu0 0.0
    %271 = vmatmul.mubr.f32.gmra.mxu0 %v195
    %v272 = vpop.f32.mrf.mxu0
    %v273 = vadd.f32 %v176, %v272
    %v274 = vpop.f32.mrf.mxu0
    %275 = vmatprep.mubr.f32.mxu0 0.0
    %276 = vmatmul.mubr.f32.gmra.mxu0 %v198
    %v277 = vpop.f32.mrf.mxu0
    %v278 = vadd.f32 %v181, %v277
    %v279 = vpop.f32.mrf.mxu0
    %280 = vmatprep.mubr.f32.mxu0 0.0
    %281 = vmatmul.mubr.f32.gmra.mxu0 %v201
    %v282 = vpop.f32.mrf.mxu0
    %v283 = vadd.f32 %v186, %v282
    %v284 = vpop.f32.mrf.mxu0
    %285 = vmatprep.mubr.f32.mxu0 0.0
    %286 = vmatmul.mubr.f32.gmra.mxu0 %v204
    %v287 = vpop.f32.mrf.mxu0
    %v288 = vadd.f32 %v191, %v287
    %v289 = vpop.f32.mrf.mxu0
    %290 = vdwg.mxu0
    %v291 = vmax.f32 %v273, 0.0
    %v292 = vmax.f32 %v278, 0.0
    %v293 = vmax.f32 %v283, 0.0
    %v294 = vmax.f32 %v288, 0.0
    %v295 = vld [vmem:[%s5] sm:$0x1]
    %v296 = vld [vmem:[#allocation2] sm:$0x1]
    %298 = vset.pattern.permute.xlu0 0
    %299 = vperm.xlu0 %298, %v296
    %v300 = vpop.permute.xlu0 %299
    %v302 = vlaneseq
    %v303 = vshrl.u32 %v302, 7
    %v304 = vsub.s32 0, %v303
    %v305 = vrot.slane %v300, %v304
    %v307 = vsel %vm193, %v295, 0
    %309 = vmatprep.subr.mxu0 0.0
    %310 = vmatpush1.msra.mxu0 0.0
    %311 = vmatprep.subr.mxu0 0.0
    %312 = vmatpush1.msra.mxu0 0.0
    %313 = vmatprep.subr.mxu0 0.0
    %314 = vmatpush1.msra.mxu0 0.0
    %315 = vmatprep.subr.mxu0 0.0
    %316 = vmatpush1.msra.mxu0 0.0
    %317 = vmatprep.subr.mxu0 0.0
    %318 = vmatpush1.msra.mxu0 0.0
    %319 = vmatprep.subr.mxu0 0.0
    %320 = vmatpush1.msra.mxu0 0.0
    %321 = vmatprep.subr.mxu0 0.0
    %322 = vmatpush1.msra.mxu0 0.0
    %323 = vmatprep.subr.mxu0 0.0
    %324 = vmatpush1.msra.mxu0 0.0
    %325 = vmatprep.subr.mxu0 0.0
    %326 = vmatpush1.msra.mxu0 0.0
    %327 = vmatprep.subr.mxu0 0.0
    %328 = vmatpush1.msra.mxu0 0.0
    %329 = vmatprep.subr.mxu0 0.0
    %330 = vmatpush1.msra.mxu0 0.0
    %331 = vmatprep.subr.mxu0 0.0
    %332 = vmatpush1.msra.mxu0 0.0
    %333 = vmatprep.subr.mxu0 0.0
    %334 = vmatpush1.msra.mxu0 %v294
    %335 = vmatprep.subr.mxu0 0.0
    %336 = vmatpush1.msra.mxu0 %v293
    %337 = vmatprep.subr.mxu0 0.0
    %338 = vmatpush1.msra.mxu0 %v292
    %339 = vmatprep.subr.mxu0 0.0
    %340 = vmatpush1.msra.mxu0 %v291
    %341 = vmatprep.subr.mxu0 0.0
    %342 = vmatpush2.msra.mxu0 0.0
    %343 = vmatprep.subr.mxu0 0.0
    %344 = vmatpush2.msra.mxu0 0.0
    %345 = vmatprep.subr.mxu0 0.0
    %346 = vmatpush2.msra.mxu0 0.0
    %347 = vmatprep.subr.mxu0 0.0
    %348 = vmatpush2.msra.mxu0 0.0
    %349 = vmatprep.subr.mxu0 0.0
    %350 = vmatpush2.msra.mxu0 0.0
    %351 = vmatprep.subr.mxu0 0.0
    %352 = vmatpush2.msra.mxu0 0.0
    %353 = vmatprep.subr.mxu0 0.0
    %354 = vmatpush2.msra.mxu0 0.0
    %355 = vmatprep.subr.mxu0 0.0
    %356 = vmatpush2.msra.mxu0 0.0
    %357 = vmatprep.subr.mxu0 0.0
    %358 = vmatpush2.msra.mxu0 0.0
    %359 = vmatprep.subr.mxu0 0.0
    %360 = vmatpush2.msra.mxu0 0.0
    %361 = vmatprep.subr.mxu0 0.0
    %362 = vmatpush2.msra.mxu0 0.0
    %363 = vmatprep.subr.mxu0 0.0
    %364 = vmatpush2.msra.mxu0 0.0
    %365 = vmatprep.subr.mxu0 0.0
    %366 = vmatpush2.msra.mxu0 0.0
    %367 = vmatprep.subr.mxu0 0.0
    %368 = vmatpush2.msra.mxu0 0.0
    %369 = vmatprep.subr.mxu0 0.0
    %370 = vmatpush2.msra.mxu0 0.0
    %371 = vmatprep.subr.mxu0 0.0
    %372 = vmatpush2.msra.mxu0 0.0
    %373 = vmatprep.mubr.f32.mxu0 0.0
    %374 = vmatmul.mubr.f32.gmra.mxu0 %v307
    %v375 = vpop.f32.mrf.mxu0
    %v376 = vadd.f32 %v305, %v375
    %v377 = vpop.f32.mrf.mxu0
    %378 = vdwg.mxu0
    %379 = vst [vmem:[#allocation3] sm:$0x1] %v376
    // Predicated region
    $region30: #{tpu_custom_call.1} parent=1 // pred_check
      _
    $region31: #{tpu_custom_call.1} parent=1 // pred_check_branch
      %381 = sbr.rel (0) target = $region33
    $region32: #{tpu_custom_call.1} parent=1 // pred_region
      %s383 = ssub.s32 16, 16
      %384 = vsyncadd [#allocation4], %s383
      %s386 = sshll.u32 [#allocation3], 4
      %s387 = int_to_ptr.vmem [resolvable:$true] %s386
      %389 = dma.vmem_to_hbm [thread:$0]  %s387, 16, %s7, [#allocation4]
    $region33: #{tpu_custom_call.1} parent=1 // pred_fallthru
      _
    // Predicated region
    $region34: #{tpu_custom_call.1} parent=1 // pred_check
      _
    $region35: #{tpu_custom_call.1} parent=1 // pred_check_branch
      %391 = sbr.rel (0) target = $region37
    $region36: #{tpu_custom_call.1} parent=1 // pred_region
      %392 = dma.done [#allocation4], 16
    $region37: #{tpu_custom_call.1} parent=1 // pred_fallthru
      _
    %393 = vsyncpa [#allocation4], 1

</llo_original>
